<compile_context>
chip_gen: v5e
topology: v5e:2x2
jax: 0.10.0
libtpu: 0.0.40
codegen_flags: <defaults>
</compile_context>

<pallas_src>
import jax
import jax.numpy as jnp
from jax.experimental import pallas as pl
from jax.experimental.pallas import tpu as pltpu

_EPS = 1e-10


def _fbn_kernel(params_ref, x_ref, o_ref):
    # params_ref (SMEM, f32[6]): [gamma, beta, thres, alpha, run_mean0, run_var0]
    # x_ref / o_ref (VMEM): full (rows, cols) array, native dtype.
    x = x_ref[...].astype(jnp.float32)

    rows, cols = x_ref.shape
    n = rows * cols
    inv_n = jnp.float32(1.0 / n)
    inv_nm1 = jnp.float32(1.0 / max(n - 1, 1))

    gamma = params_ref[0]
    beta = params_ref[1]
    thres = params_ref[2]
    alpha = params_ref[3]
    run_mean0 = params_ref[4]
    run_var0 = params_ref[5]

    # --- pass 1: full-tensor mean / unbiased variance ---------------------
    mean1 = jnp.sum(x) * inv_n
    xc = x - mean1
    xc2 = xc * xc
    var1 = jnp.sum(xc2) * inv_nm1

    # --- threshold filter --------------------------------------------------
    # (x - mean1)/sqrt(var1+eps) in (-T, T)  <=>  |x - mean1| < T*sqrt(var1+eps)
    thres_abs = thres * jnp.sqrt(var1 + _EPS)
    sel = jnp.abs(xc) < thres_abs
    sel_f = sel.astype(jnp.float32)

    # --- pass 2 (fused): filtered mean / unbiased variance -----------------
    # mean1-shifted sums keep this numerically safe.
    cnt = jnp.sum(sel_f)
    s1 = jnp.sum(sel_f * xc)
    s2 = jnp.sum(sel_f * xc2)
    inv_cnt = 1.0 / cnt
    mean2 = mean1 + s1 * inv_cnt
    var2 = (s2 - s1 * s1 * inv_cnt) / (cnt - 1.0)

    # --- running-stat EMA (runtime scalars -> no recompile across steps) ---
    run_mean = alpha * run_mean0 + (1.0 - alpha) * mean2
    run_var = alpha * run_var0 + (1.0 - alpha) * var2

    # --- output pass: one fused multiply-add per element --------------------
    scale = gamma * jax.lax.rsqrt(run_var + _EPS)
    bias = beta - run_mean * scale
    o_ref[...] = (x * scale + bias).astype(o_ref.dtype)


def bn1d_filtered_moments(xorig, gamma, beta, *, thres=4.0, alpha=0.9,
                          run_mean=0.0, run_var=1.0):
    """Forward pass equivalent of BN1dFitleredMoments.

    gamma/beta/thres/alpha/run_mean/run_var may be Python floats or (0-d/1-elem)
    JAX arrays; they are passed to the kernel as runtime SMEM scalars, so the
    kernel never recompiles when the EMA state changes between steps.
    """
    orig_shape = xorig.shape

    # Keep the native 2-D (batch, features) shape; only non-2-D inputs are
    # viewed as 2-D (row-major, same flatten order as torch .view(-1)).
    if xorig.ndim == 2:
        x2d = xorig
    elif xorig.ndim > 2:
        x2d = xorig.reshape(orig_shape[0], -1)
    else:
        x2d = xorig.reshape(1, -1)

    params = jnp.concatenate([
        jnp.asarray(gamma, jnp.float32).reshape(1),
        jnp.asarray(beta, jnp.float32).reshape(1),
        jnp.asarray(thres, jnp.float32).reshape(1),
        jnp.asarray(alpha, jnp.float32).reshape(1),
        jnp.asarray(run_mean, jnp.float32).reshape(1),
        jnp.asarray(run_var, jnp.float32).reshape(1),
    ])

    # Generation-aware scoped-VMEM hint: input block + output block + f32
    # element-wise temporaries, with headroom, capped well under v7x's 64 MiB.
    itemsize = jnp.dtype(x2d.dtype).itemsize
    work_bytes = x2d.size * (2 * itemsize + 6 * 4)
    vmem_limit = int(min(max(work_bytes + (2 << 20), 16 << 20), 48 << 20))

    out = pl.pallas_call(
        _fbn_kernel,
        out_shape=jax.ShapeDtypeStruct(x2d.shape, x2d.dtype),
        in_specs=[
            pl.BlockSpec(memory_space=pltpu.MemorySpace.SMEM),  # params
            pl.BlockSpec(memory_space=pltpu.MemorySpace.VMEM),  # x (full block)
        ],
        out_specs=pl.BlockSpec(memory_space=pltpu.MemorySpace.VMEM),
        compiler_params=pltpu.CompilerParams(vmem_limit_bytes=vmem_limit),
    )(params, x2d)

    return out.reshape(orig_shape)


def _reference(xorig, gamma, beta, thres=4.0, alpha=0.9,
               run_mean=0.0, run_var=1.0):
    """Pure-JAX reference mirroring the PyTorch forward."""
    x = xorig.reshape(-1).astype(jnp.float32)
    n = x.shape[0]
    mean1 = jnp.mean(x)
    var1 = jnp.sum((x - mean1) ** 2) / (n - 1)
    normalized = (x - mean1) / jnp.sqrt(var1 + _EPS)
    sel = (normalized < thres) & (normalized > -thres)
    cnt = jnp.sum(sel.astype(jnp.float32))
    mean2 = jnp.sum(jnp.where(sel, x, 0.0)) / cnt
    var2 = jnp.sum(jnp.where(sel, (x - mean2) ** 2, 0.0)) / (cnt - 1.0)
    rm = alpha * run_mean + (1.0 - alpha) * mean2
    rv = alpha * run_var + (1.0 - alpha) * var2
    return gamma * (xorig - rm) / jnp.sqrt(rv + _EPS) + beta


if __name__ == "__main__":
    key = jax.random.PRNGKey(0)
    # BN1d-style input: (batch=8, hidden=32)
    x = jax.random.normal(key, (8, 32), dtype=jnp.float32) * 2.0 + 0.5
    # inject a couple of outliers so the threshold filter actually prunes
    x = x.at[0, 0].set(50.0).at[1, 3].set(-40.0)

    # deterministic parameter init, exactly as in the module __init__
    gamma = jnp.array(1.0, dtype=jnp.float32)
    beta = jnp.array(0.0, dtype=jnp.float32)

    out = bn1d_filtered_moments(x, gamma, beta, thres=4.0)
    out = jax.block_until_ready(out)

    ref = _reference(x, gamma, beta, thres=4.0)
    assert out.shape == x.shape
    assert out.dtype == x.dtype
    assert jnp.allclose(out, ref, atol=1e-3, rtol=1e-3)

    print("KERNEL_OK")
</pallas_src>

<mosaic_0001>
module attributes {stable_mosaic.version = 11 : i64} {
  func.func @_fbn_kernel(%arg0: memref<6xf32, #tpu.memory_space<smem>>, %arg1: memref<8x32xf32, #tpu.memory_space<vmem>>, %arg2: memref<8x32xf32, #tpu.memory_space<vmem>>) attributes {dimension_semantics = [], scalar_prefetch = 0 : i64, scratch_operands = 0 : i64, tpu.core_type = #tpu.core_type<tc>} {
    %c0 = arith.constant 0 : index
    %c0_0 = arith.constant 0 : index
    %0 = vector.load %arg1[%c0, %c0_0] : memref<8x32xf32, #tpu.memory_space<vmem>>, vector<8x32xf32>
    %c0_1 = arith.constant 0 : index
    %1 = memref.load %arg0[%c0_1] : memref<6xf32, #tpu.memory_space<smem>>
    %c1 = arith.constant 1 : index
    %2 = memref.load %arg0[%c1] : memref<6xf32, #tpu.memory_space<smem>>
    %c2 = arith.constant 2 : index
    %3 = memref.load %arg0[%c2] : memref<6xf32, #tpu.memory_space<smem>>
    %c3 = arith.constant 3 : index
    %4 = memref.load %arg0[%c3] : memref<6xf32, #tpu.memory_space<smem>>
    %c4 = arith.constant 4 : index
    %5 = memref.load %arg0[%c4] : memref<6xf32, #tpu.memory_space<smem>>
    %c5 = arith.constant 5 : index
    %6 = memref.load %arg0[%c5] : memref<6xf32, #tpu.memory_space<smem>>
    %7 = vector.shape_cast %0 : vector<8x32xf32> to vector<1x8x32xf32>
    %cst = arith.constant dense<0.000000e+00> : vector<1xf32>
    %8 = vector.multi_reduction <add>, %7, %cst [1, 2] : vector<1x8x32xf32> to vector<1xf32>
    %9 = vector.shape_cast %8 : vector<1xf32> to vector<1x1x1xf32>
    %10 = vector.extract %9[0, 0, 0] : f32 from vector<1x1x1xf32>
    %cst_2 = arith.constant 3.906250e-03 : f32
    %11 = arith.mulf %10, %cst_2 : f32
    %12 = vector.broadcast %11 : f32 to vector<8x32xf32>
    %13 = arith.subf %0, %12 : vector<8x32xf32>
    %14 = arith.mulf %13, %13 : vector<8x32xf32>
    %15 = vector.shape_cast %14 : vector<8x32xf32> to vector<1x8x32xf32>
    %cst_3 = arith.constant dense<0.000000e+00> : vector<1xf32>
    %16 = vector.multi_reduction <add>, %15, %cst_3 [1, 2] : vector<1x8x32xf32> to vector<1xf32>
    %17 = vector.shape_cast %16 : vector<1xf32> to vector<1x1x1xf32>
    %18 = vector.extract %17[0, 0, 0] : f32 from vector<1x1x1xf32>
    %cst_4 = arith.constant 0.00392156886 : f32
    %19 = arith.mulf %18, %cst_4 : f32
    %cst_5 = arith.constant 1.000000e-10 : f32
    %20 = arith.addf %19, %cst_5 : f32
    %21 = math.sqrt %20 : f32
    %22 = arith.mulf %3, %21 : f32
    %23 = math.absf %13 : vector<8x32xf32>
    %24 = vector.broadcast %22 : f32 to vector<8x32xf32>
    %25 = arith.cmpf olt, %23, %24 : vector<8x32xf32>
    %26 = arith.extui %25 : vector<8x32xi1> to vector<8x32xi32>
    %27 = arith.sitofp %26 : vector<8x32xi32> to vector<8x32xf32>
    %28 = vector.shape_cast %27 : vector<8x32xf32> to vector<1x8x32xf32>
    %cst_6 = arith.constant dense<0.000000e+00> : vector<1xf32>
    %29 = vector.multi_reduction <add>, %28, %cst_6 [1, 2] : vector<1x8x32xf32> to vector<1xf32>
    %30 = vector.shape_cast %29 : vector<1xf32> to vector<1x1x1xf32>
    %31 = vector.extract %30[0, 0, 0] : f32 from vector<1x1x1xf32>
    %32 = arith.mulf %27, %13 : vector<8x32xf32>
    %33 = vector.shape_cast %32 : vector<8x32xf32> to vector<1x8x32xf32>
    %cst_7 = arith.constant dense<0.000000e+00> : vector<1xf32>
    %34 = vector.multi_reduction <add>, %33, %cst_7 [1, 2] : vector<1x8x32xf32> to vector<1xf32>
    %35 = vector.shape_cast %34 : vector<1xf32> to vector<1x1x1xf32>
    %36 = vector.extract %35[0, 0, 0] : f32 from vector<1x1x1xf32>
    %37 = arith.mulf %27, %14 : vector<8x32xf32>
    %38 = vector.shape_cast %37 : vector<8x32xf32> to vector<1x8x32xf32>
    %cst_8 = arith.constant dense<0.000000e+00> : vector<1xf32>
    %39 = vector.multi_reduction <add>, %38, %cst_8 [1, 2] : vector<1x8x32xf32> to vector<1xf32>
    %40 = vector.shape_cast %39 : vector<1xf32> to vector<1x1x1xf32>
    %41 = vector.extract %40[0, 0, 0] : f32 from vector<1x1x1xf32>
    %cst_9 = arith.constant 1.000000e+00 : f32
    %42 = arith.divf %cst_9, %31 : f32
    %43 = arith.mulf %36, %42 : f32
    %44 = arith.addf %11, %43 : f32
    %45 = arith.mulf %36, %36 : f32
    %46 = arith.mulf %45, %42 : f32
    %47 = arith.subf %41, %46 : f32
    %cst_10 = arith.constant 1.000000e+00 : f32
    %48 = arith.subf %31, %cst_10 : f32
    %49 = arith.divf %47, %48 : f32
    %50 = arith.mulf %4, %5 : f32
    %cst_11 = arith.constant 1.000000e+00 : f32
    %51 = arith.subf %cst_11, %4 : f32
    %52 = arith.mulf %51, %44 : f32
    %53 = arith.addf %50, %52 : f32
    %54 = arith.mulf %4, %6 : f32
    %cst_12 = arith.constant 1.000000e+00 : f32
    %55 = arith.subf %cst_12, %4 : f32
    %56 = arith.mulf %55, %49 : f32
    %57 = arith.addf %54, %56 : f32
    %cst_13 = arith.constant 1.000000e-10 : f32
    %58 = arith.addf %57, %cst_13 : f32
    %59 = math.rsqrt %58 : f32
    %60 = arith.mulf %1, %59 : f32
    %61 = arith.mulf %53, %60 : f32
    %62 = arith.subf %2, %61 : f32
    %63 = vector.broadcast %60 : f32 to vector<8x32xf32>
    %64 = arith.mulf %0, %63 : vector<8x32xf32>
    %65 = vector.broadcast %62 : f32 to vector<8x32xf32>
    %66 = arith.addf %64, %65 : vector<8x32xf32>
    %c0_14 = arith.constant 0 : index
    %c0_15 = arith.constant 0 : index
    %67 = vector.load %arg2[%c0_14, %c0_15] : memref<8x32xf32, #tpu.memory_space<vmem>>, vector<8x32xf32>
    tpu.vector_store %arg2[%c0_14, %c0_15], %66 {strides = array<i32>} : memref<8x32xf32, #tpu.memory_space<vmem>>, vector<8x32xf32>,
    return
  }
}

</mosaic_0001>

<llo_original>
// kernel: tpu_custom_call.1
$region0: #{tpu_custom_call.1}
  #allocation0 [shape = 'u32[]', space=smem, size = 0x4, offset = 0x4, fixed_abs, tag = 'smem constant byte address 0x4 - core index']
  #allocation1 [shape = 'u32[72,128]{1,0:T(1,128)}', space=vmem, size = 0x9000, scoped, tag = 'internal scratch']
  %s0 = inlined_call_operand.hbm [shape: f32[6], index: 0, kind: input, shape index: {}]
  %s1 = inlined_call_operand.hbm [shape: f32[8,32], index: 1, kind: input, shape index: {}]
  %s2 = inlined_call_operand.hbm [shape: f32[8,32], index: 2, kind: output, shape index: {}]
  %s3 = sld [smem:[#allocation0]]
  $region26: #{tpu_custom_call.1} parent=0
    _
  %s5 = ssub.s32 1, %s3
  %s6 = scalar_select 0, %s5, %s3
  $region1: #{tpu_custom_call.1} parent=0
    #allocation2 [shape = 'u8[512]{0}', space=smem, size = 0x200, scoped, tag = 'input window, operand 0, single buffered']
    #allocation3 [shape = 's32[1]{0}', space=sflag, size = 0x4, scoped, tag = 'scoped memory for tpu_custom_call.1']
    #allocation4 [shape = 's32[1]{0}', space=sflag, size = 0x4, scoped, tag = 'scoped memory for tpu_custom_call.1']
    #allocation5 [shape = 's32[1]{0}', space=sflag, size = 0x4, scoped, tag = 'scoped memory for tpu_custom_call.1']
    #allocation6 [shape = 'u8[4096]{0}', space=vmem, size = 0x1000, scoped, tag = 'input window, operand 1, single buffered']
    #allocation7 [shape = 'u8[4096]{0}', space=vmem, size = 0x1000, scoped, tag = 'output window, operand 0, single buffered']
    %7 = vsyncpa [#allocation5], 0
    %8 = vsyncpa [#allocation3], 0
    %9 = vsyncpa [#allocation4], 0
    // Predicated region
    $region2: #{tpu_custom_call.1} parent=1 // pred_check
      _
    $region3: #{tpu_custom_call.1} parent=1 // pred_check_branch
      %11 = sbr.rel (0) target = $region5
    $region4: #{tpu_custom_call.1} parent=1 // pred_region
      %13 = vsyncadd [#allocation5], 0
      %s15 = sshll.u32 %s0, 4
      %s16 = int_to_ptr.hbm [resolvable:$true] %s15
      %18 = dma.hbm_to_smem %s16, 16, [#allocation2], [#allocation5]
    $region5: #{tpu_custom_call.1} parent=1 // pred_fallthru
      _
    // Predicated region
    $region6: #{tpu_custom_call.1} parent=1 // pred_check
      _
    $region7: #{tpu_custom_call.1} parent=1 // pred_check_branch
      %20 = sbr.rel (0) target = $region9
    $region8: #{tpu_custom_call.1} parent=1 // pred_region
      %22 = vsyncadd [#allocation3], 0
      %s24 = sshll.u32 %s1, 4
      %s25 = int_to_ptr.hbm [resolvable:$true] %s24
      %s26 = sshll.u32 [#allocation6], 4
      %s27 = int_to_ptr.vmem [resolvable:$true] %s26
      %29 = dma.hbm_to_vmem [thread:$0]  %s25, 128, %s27, [#allocation3]
    $region9: #{tpu_custom_call.1} parent=1 // pred_fallthru
      _
    // Predicated region
    $region10: #{tpu_custom_call.1} parent=1 // pred_check
      _
    $region11: #{tpu_custom_call.1} parent=1 // pred_check_branch
      %31 = sbr.rel (0) target = $region13
    $region12: #{tpu_custom_call.1} parent=1 // pred_region
      %33 = dma.done [#allocation5], 16
    $region13: #{tpu_custom_call.1} parent=1 // pred_fallthru
      _
    // Predicated region
    $region14: #{tpu_custom_call.1} parent=1 // pred_check
      _
    $region15: #{tpu_custom_call.1} parent=1 // pred_check_branch
      %35 = sbr.rel (0) target = $region17
    $region16: #{tpu_custom_call.1} parent=1 // pred_region
      %37 = dma.done [#allocation3], 128
    $region17: #{tpu_custom_call.1} parent=1 // pred_fallthru
      _
    %38 = sfence
    %v39 = vld [vmem:[#allocation6] sm:$0xff]
    %s40 = sld [smem:[#allocation2]]
    %s41 = sld [smem:[#allocation2 + $0x1]]
    %s42 = sld [smem:[#allocation2 + $0x2]]
    %s43 = sld [smem:[#allocation2 + $0x3]]
    %s44 = sld [smem:[#allocation2 + $0x4]]
    %s45 = sld [smem:[#allocation2 + $0x5]]
    %vm46 = vcmask 261120
    %v47 = vsel %vm46, %v39, 0.0
    %48 = vadd.xlane.f32.xlu0 %v47
    %v49 = vpop.xlane.xlu0 %48
    %v50 = vrot.slane %v49, 4
    %v51 = vadd.f32 %v49, %v50
    %v52 = vrot.slane %v51, 2
    %v53 = vadd.f32 %v51, %v52
    %v54 = vrot.slane %v53, 1
    %v55 = vadd.f32 %v53, %v54
    %s56 = vtos %v55
    %s57 = smul.f32 %s56, 0.00390625
    %v58 = vstv %s57
    %v59 = vsub.f32 %v39, %v58
    %v60 = vmul.f32 %v59, %v59
    %v61 = vsel %vm46, %v60, 0.0
    %62 = vadd.xlane.f32.xlu0 %v61
    %v63 = vpop.xlane.xlu0 %62
    %v64 = vrot.slane %v63, 4
    %v65 = vadd.f32 %v63, %v64
    %v66 = vrot.slane %v65, 2
    %v67 = vadd.f32 %v65, %v66
    %v68 = vrot.slane %v67, 1
    %v69 = vadd.f32 %v67, %v68
    %s70 = vtos %v69
    %s71 = smul.f32 %s70, 0.003921569
    %s72 = sadd.f32 %s71, 1e-10
    %v73 = vstv %s72
    %v74 = vrsqrt.pop %v73
    %v75 = vmul.f32 %v74, %v73
    %v76 = vmul.f32 %v75, %v74
    %v77 = vmul.f32 0.5, %v76
    %v78 = vsub.f32 1.5, %v77
    %v79 = vmul.f32 %v74, %v78
    %v80 = vmul.f32 %v73, %v79
    %vm81 = vcmp.eq.f32.partialorder %v73, inf
    %v82 = vsel %vm81, %v73, %v80
    %vm83 = vcmp.eq.f32.partialorder %v73, 0.0
    %v84 = vand.u32 %v73, 2147483648
    %v85 = vsel %vm83, %v84, %v82
    %s86 = vtos %v85
    %s87 = smul.f32 %s42, %s86
    %v88 = vand.u32 2147483647, %v59
    %v89 = vstv %s87
    %vm90 = vcmp.lt.f32.partialorder %v88, %v89
    %v91 = vsel %vm90, 1, 0
    %v92 = vcvt.s32.f32 %v91
    %v93 = vsel %vm46, %v92, 0.0
    %94 = vadd.xlane.f32.xlu0 %v93
    %v95 = vpop.xlane.xlu0 %94
    %v96 = vrot.slane %v95, 4
    %v97 = vadd.f32 %v95, %v96
    %v98 = vrot.slane %v97, 2
    %v99 = vadd.f32 %v97, %v98
    %v100 = vrot.slane %v99, 1
    %v101 = vadd.f32 %v99, %v100
    %s102 = vtos %v101
    %v103 = vmul.f32 %v92, %v59
    %v104 = vsel %vm46, %v103, 0.0
    %105 = vadd.xlane.f32.xlu0 %v104
    %v106 = vpop.xlane.xlu0 %105
    %v107 = vrot.slane %v106, 4
    %v108 = vadd.f32 %v106, %v107
    %v109 = vrot.slane %v108, 2
    %v110 = vadd.f32 %v108, %v109
    %v111 = vrot.slane %v110, 1
    %v112 = vadd.f32 %v110, %v111
    %s113 = vtos %v112
    %v114 = vmul.f32 %v92, %v60
    %v115 = vsel %vm46, %v114, 0.0
    %116 = vadd.xlane.f32.xlu0 %v115
    %v117 = vpop.xlane.xlu0 %116
    %v118 = vrot.slane %v117, 4
    %v119 = vadd.f32 %v117, %v118
    %v120 = vrot.slane %v119, 2
    %v121 = vadd.f32 %v119, %v120
    %v122 = vrot.slane %v121, 1
    %v123 = vadd.f32 %v121, %v122
    %s124 = vtos %v123
    %v125 = vstv %s102
    %v126 = vrcp.pop %v125
    %v127 = vmul.f32 %v125, %v126
    %v128 = vsub.f32 1.0, %v127
    %v129 = vmul.f32 %v126, %v128
    %v130 = vadd.f32 %v126, %v129
    %vm131 = vweird.f32 %v125
    %vm132 = vweird.f32 %v126
    %vm133 = vmor %vm131, %vm132
    %v134 = vsel %vm133, %v126, %v130
    %v135 = vand.u32 2147483647, %v125
    %vm136 = vcmp.eq.f32.partialorder %v135, 8.507059e+37
    %v137 = vand.u32 %v125, 2147483648
    %v138 = vor.u32 1.1754944e-38, %v137
    %v139 = vsel %vm136, %v138, %v134
    %s140 = vtos %v139
    %s141 = smul.f32 %s113, %s140
    %s142 = sadd.f32 %s57, %s141
    %s143 = smul.f32 %s113, %s113
    %s144 = smul.f32 %s143, %s140
    %s145 = ssub.f32 %s124, %s144
    %s146 = ssub.f32 %s102, 1.0
    %v147 = vstv %s146
    %v148 = vrcp.pop %v147
    %v149 = vmul.f32 %v147, %v148
    %v150 = vsub.f32 1.0, %v149
    %v151 = vmul.f32 %v148, %v150
    %v152 = vadd.f32 %v148, %v151
    %vm153 = vweird.f32 %v147
    %vm154 = vweird.f32 %v148
    %vm155 = vmor %vm153, %vm154
    %v156 = vsel %vm155, %v148, %v152
    %v157 = vand.u32 2147483647, %v147
    %vm158 = vcmp.eq.f32.partialorder %v157, 8.507059e+37
    %v159 = vand.u32 %v147, 2147483648
    %v160 = vor.u32 1.1754944e-38, %v159
    %v161 = vsel %vm158, %v160, %v156
    %s162 = vtos %v161
    %s163 = smul.f32 %s145, %s162
    %s164 = smul.f32 %s43, %s44
    %s165 = ssub.f32 1.0, %s43
    %s166 = smul.f32 %s165, %s142
    %s167 = sadd.f32 %s164, %s166
    %s168 = smul.f32 %s43, %s45
    %s169 = smul.f32 %s165, %s163
    %s170 = sadd.f32 %s168, %s169
    %s171 = sadd.f32 %s170, 1e-10
    %v172 = vstv %s171
    %v173 = vrsqrt.pop %v172
    %v174 = vmul.f32 %v173, %v172
    %v175 = vmul.f32 %v174, %v173
    %v176 = vmul.f32 0.5, %v175
    %v177 = vsub.f32 1.5, %v176
    %v178 = vmul.f32 %v173, %v177
    %vm179 = vweird.f32 %v172
    %vm180 = vweird.f32 %v173
    %vm181 = vmor %vm179, %vm180
    %v182 = vsel %vm181, %v173, %v178
    %s183 = vtos %v182
    %s184 = smul.f32 %s40, %s183
    %s185 = smul.f32 %s167, %s184
    %s186 = ssub.f32 %s41, %s185
    %v187 = vstv %s184
    %v188 = vmul.f32 %v39, %v187
    %v189 = vstv %s186
    %v190 = vadd.f32 %v188, %v189
    %191 = vst.msk [vmem:[#allocation7] sm:$0xff] %vm46, %v190
    // Predicated region
    $region18: #{tpu_custom_call.1} parent=1 // pred_check
      _
    $region19: #{tpu_custom_call.1} parent=1 // pred_check_branch
      %193 = sbr.rel (0) target = $region21
    $region20: #{tpu_custom_call.1} parent=1 // pred_region
      %195 = vsyncadd [#allocation4], 0
      %s197 = sshll.u32 [#allocation7], 4
      %s198 = int_to_ptr.vmem [resolvable:$true] %s197
      %s199 = sshll.u32 %s2, 4
      %s200 = int_to_ptr.hbm [resolvable:$true] %s199
      %202 = dma.vmem_to_hbm [thread:$0]  %s198, 128, %s200, [#allocation4]
    $region21: #{tpu_custom_call.1} parent=1 // pred_fallthru
      _
    // Predicated region
    $region22: #{tpu_custom_call.1} parent=1 // pred_check
      _
    $region23: #{tpu_custom_call.1} parent=1 // pred_check_branch
      %204 = sbr.rel (0) target = $region25
    $region24: #{tpu_custom_call.1} parent=1 // pred_region
      %206 = dma.done [#allocation4], 128
    $region25: #{tpu_custom_call.1} parent=1 // pred_fallthru
      _
    %207 = vsyncpa [#allocation3], 1
    %208 = vsyncpa [#allocation4], 1
    %209 = vsyncpa [#allocation5], 1

</llo_original>
